<compile_context>
chip_gen: v6e
topology: v6e:2x2x1
jax: 0.10.0
libtpu: 0.0.40
codegen_flags: <defaults>
</compile_context>

<pallas_src>
import functools

import jax
import jax.numpy as jnp
from jax.experimental import pallas as pl
from jax.experimental.pallas import tpu as pltpu

_NEG_PAD = -1e30  # bias value for padded class lanes: exp(pad - max) == 0 in the log-sum-exp


# ---------------------------------------------------------------------------
# Fused kernel: fc1 + ReLU + ONE packed head matmul + per-task log_softmax
# ---------------------------------------------------------------------------
def fused_mlp_kernel(x_ref, w1_ref, b1_ref, wc_ref, bc_ref, o_ref):
    # x:  (B, Din), w1: (Din, H), b1: (1, H)
    # wc: (H, T*Npad) packed heads (pad weight cols = 0), bc: (1, T*Npad) (pad lanes = -1e30)
    # o:  (T, B, Npad) log-probabilities (pad lanes ~ -1e30, ignored / sliced off downstream)
    h = jnp.dot(x_ref[...], w1_ref[...], preferred_element_type=jnp.float32)
    h = jnp.maximum(h + b1_ref[...], 0.0)

    # Single MXU push for every task head (256-wide for T=2: fills the v6e/v7x MXU).
    logits_all = jnp.dot(h, wc_ref[...], preferred_element_type=jnp.float32) + bc_ref[...]

    num_tasks, _, n_pad = o_ref.shape
    for t in range(num_tasks):  # static unroll; T is tiny
        logits = logits_all[:, t * n_pad:(t + 1) * n_pad]   # static, 128-lane-aligned slice
        m = jnp.max(logits, axis=1, keepdims=True)          # pad lanes never win the max
        z = logits - m
        lse = jnp.log(jnp.sum(jnp.exp(z), axis=1, keepdims=True))  # pad lanes contribute exp()=0
        o_ref[t] = z - lse


# ---------------------------------------------------------------------------
# One-time parameter prep (NOT in the per-call path)
# ---------------------------------------------------------------------------
def prepare_head_params(w_cls, b_cls):
    """Pad the class dim to a lane-dense multiple of 128 and pack all task heads into one matrix.

    w_cls: (T, H, N), b_cls: (T, 1, N)
    Returns wc_packed (H, T*Npad), bc_packed (1, T*Npad), Npad.
    Pad weight columns are 0; pad bias lanes are -1e30 so they vanish in the LSE.
    """
    T, H, N = w_cls.shape
    n_pad = ((N + 127) // 128) * 128
    wc = jnp.pad(w_cls, ((0, 0), (0, 0), (0, n_pad - N)))                              # (T, H, Npad)
    bc = jnp.pad(b_cls, ((0, 0), (0, 0), (0, n_pad - N)), constant_values=_NEG_PAD)    # (T, 1, Npad)
    wc_packed = jnp.transpose(wc, (1, 0, 2)).reshape(H, T * n_pad)
    bc_packed = bc.reshape(1, T * n_pad)
    return wc_packed, bc_packed, n_pad


# ---------------------------------------------------------------------------
# Forward wrapper (hot path: flatten + one pallas_call, nothing else)
# ---------------------------------------------------------------------------
@functools.partial(jax.jit, static_argnames=("num_tasks",))
def bayesian_mlp_forward(x, w1, b1, wc_packed, bc_packed, *, num_tasks):
    """x: (B, C, H, W) float32.  Returns padded (T, B, Npad) per-task log-softmax outputs;
    the first N lanes of the last axis are the valid log-probabilities (slice deferred to
    the consumer to avoid an extra lane-sparse copy in the latency-bound regime)."""
    B = x.shape[0]
    xf = x.reshape(B, -1)                    # torch .view(x.size(0), -1)
    Din = xf.shape[1]
    H = w1.shape[1]
    TN = wc_packed.shape[1]
    n_pad = TN // num_tasks

    vmem = pl.BlockSpec(memory_space=pltpu.MemorySpace.VMEM)

    cost = pl.CostEstimate(
        flops=2 * B * Din * H + 2 * B * H * TN + 4 * B * (H + TN),
        transcendentals=B * (TN + num_tasks),                 # exp per lane + log per (task,row)
        bytes_accessed=4 * (B * Din + Din * H + H + H * TN + TN + num_tasks * B * n_pad),
    )

    y_pad = pl.pallas_call(
        fused_mlp_kernel,
        out_shape=jax.ShapeDtypeStruct((num_tasks, B, n_pad), jnp.float32),
        in_specs=[vmem, vmem, vmem, vmem, vmem],
        out_specs=vmem,
        cost_estimate=cost,
    )(xf, w1, b1, wc_packed, bc_packed)

    return y_pad  # (T, B, Npad); lanes >= N are ~-1e30, not valid log-probs


# ---------------------------------------------------------------------------
# Pure-JAX reference (for correctness sanity check)
# ---------------------------------------------------------------------------
def reference_forward(x, w1, b1, w_cls, b_cls):
    B = x.shape[0]
    xf = x.reshape(B, -1)
    h = jnp.maximum(xf @ w1 + b1, 0.0)
    logits = jnp.einsum("bh,thn->tbn", h, w_cls) + b_cls
    return jax.nn.log_softmax(logits, axis=-1)


if __name__ == "__main__":
    # ---- deterministic setup (synthetic weights; no checkpoint load) ----
    key = jax.random.PRNGKey(0)
    k_x, k_w1, k_b1, k_wc, k_bc = jax.random.split(key, 5)

    # args.inputsize = (ncha, size, size); args.nhid = dim; args.taskcla
    B, C, S = 2, 4, 16            # batch=2, channels=4, spatial=16x16
    Din = C * S * S               # ncha * size * size = 1024
    Hdim = 32                     # args.nhid
    taskcla = [(0, 10), (1, 10)]  # 2 tasks, 10 classes each (head='multi')
    T = len(taskcla)
    N = taskcla[0][1]

    x = jax.random.normal(k_x, (B, C, S, S), dtype=jnp.float32)

    # BayesianLinear posterior-mean weights (transposed to (in, out) layout)
    w1 = 0.05 * jax.random.normal(k_w1, (Din, Hdim), dtype=jnp.float32)
    b1 = 0.05 * jax.random.normal(k_b1, (1, Hdim), dtype=jnp.float32)
    w_cls = 0.05 * jax.random.normal(k_wc, (T, Hdim, N), dtype=jnp.float32)
    b_cls = 0.05 * jax.random.normal(k_bc, (T, 1, N), dtype=jnp.float32)

    # One-time parameter prep (hoisted out of the per-call path).
    wc_packed, bc_packed, Npad = prepare_head_params(w_cls, b_cls)
    wc_packed = jax.block_until_ready(wc_packed)
    bc_packed = jax.block_until_ready(bc_packed)

    out_pad = bayesian_mlp_forward(x, w1, b1, wc_packed, bc_packed, num_tasks=T)
    out_pad = jax.block_until_ready(out_pad)
    assert out_pad.shape == (T, B, Npad), out_pad.shape

    # Verification only (not the hot path): slice the valid class lanes and compare.
    out = out_pad[..., :N]
    ref = reference_forward(x, w1, b1, w_cls, b_cls)
    assert out.shape == (T, B, N), out.shape
    assert jnp.allclose(out, ref, atol=1e-4, rtol=1e-4), "mismatch vs reference"
    # each row of log_softmax output should exp-sum to 1
    assert jnp.allclose(jnp.exp(out).sum(axis=-1), 1.0, atol=1e-4)

    print("KERNEL_OK")
</pallas_src>

<mosaic_0001>
module attributes {stable_mosaic.version = 11 : i64} {
  func.func @fused_mlp_kernel(%arg0: memref<2x1024xf32, #tpu.memory_space<vmem>>, %arg1: memref<1024x32xf32, #tpu.memory_space<vmem>>, %arg2: memref<1x32xf32, #tpu.memory_space<vmem>>, %arg3: memref<32x256xf32, #tpu.memory_space<vmem>>, %arg4: memref<1x256xf32, #tpu.memory_space<vmem>>, %arg5: memref<2x2x128xf32, #tpu.memory_space<vmem>>) attributes {dimension_semantics = [], scalar_prefetch = 0 : i64, scratch_operands = 0 : i64, tpu.core_type = #tpu.core_type<tc>} {
    %c0 = arith.constant 0 : index
    %c0_0 = arith.constant 0 : index
    %0 = vector.load %arg0[%c0, %c0_0] : memref<2x1024xf32, #tpu.memory_space<vmem>>, vector<2x1024xf32>
    %c0_1 = arith.constant 0 : index
    %c0_2 = arith.constant 0 : index
    %1 = vector.load %arg1[%c0_1, %c0_2] : memref<1024x32xf32, #tpu.memory_space<vmem>>, vector<1024x32xf32>
    %cst = arith.constant dense<0.000000e+00> : vector<2x32xf32>
    %2 = tpu.matmul %0, %1, %cst {dimension_numbers = #tpu.dot_dimension_numbers<[1], [0], [0], [1], [0, 0, 1, 1], [], []>} : vector<2x1024xf32>, vector<1024x32xf32>, vector<2x32xf32> -> vector<2x32xf32>
    %c0_3 = arith.constant 0 : index
    %c0_4 = arith.constant 0 : index
    %3 = vector.load %arg2[%c0_3, %c0_4] : memref<1x32xf32, #tpu.memory_space<vmem>>, vector<1x32xf32>
    %4 = vector.broadcast %3 : vector<1x32xf32> to vector<2x32xf32>
    %5 = arith.addf %2, %4 : vector<2x32xf32>
    %cst_5 = arith.constant 0.000000e+00 : f32
    %6 = vector.broadcast %cst_5 : f32 to vector<2x32xf32>
    %7 = arith.maximumf %5, %6 : vector<2x32xf32>
    %c0_6 = arith.constant 0 : index
    %c0_7 = arith.constant 0 : index
    %8 = vector.load %arg3[%c0_6, %c0_7] : memref<32x256xf32, #tpu.memory_space<vmem>>, vector<32x256xf32>
    %cst_8 = arith.constant dense<0.000000e+00> : vector<2x256xf32>
    %9 = tpu.matmul %7, %8, %cst_8 {dimension_numbers = #tpu.dot_dimension_numbers<[1], [0], [0], [1], [0, 0, 1, 1], [], []>} : vector<2x32xf32>, vector<32x256xf32>, vector<2x256xf32> -> vector<2x256xf32>
    %c0_9 = arith.constant 0 : index
    %c0_10 = arith.constant 0 : index
    %10 = vector.load %arg4[%c0_9, %c0_10] : memref<1x256xf32, #tpu.memory_space<vmem>>, vector<1x256xf32>
    %11 = vector.broadcast %10 : vector<1x256xf32> to vector<2x256xf32>
    %12 = arith.addf %9, %11 : vector<2x256xf32>
    %13 = vector.extract_strided_slice %12 {offsets = [0, 0], sizes = [2, 128], strides = [1, 1]} : vector<2x256xf32> to vector<2x128xf32>
    %cst_11 = arith.constant dense<0xFF800000> : vector<2xf32>
    %14 = vector.multi_reduction <maximumf>, %13, %cst_11 [1] : vector<2x128xf32> to vector<2xf32>
    %15 = vector.shape_cast %14 : vector<2xf32> to vector<2x1xf32>
    %16 = vector.broadcast %15 : vector<2x1xf32> to vector<2x128xf32>
    %17 = arith.subf %13, %16 : vector<2x128xf32>
    %18 = math.exp %17 : vector<2x128xf32>
    %cst_12 = arith.constant dense<0.000000e+00> : vector<2xf32>
    %19 = vector.multi_reduction <add>, %18, %cst_12 [1] : vector<2x128xf32> to vector<2xf32>
    %20 = vector.shape_cast %19 : vector<2xf32> to vector<2x1xf32>
    %21 = math.log %20 : vector<2x1xf32>
    %22 = vector.broadcast %21 : vector<2x1xf32> to vector<2x128xf32>
    %23 = arith.subf %17, %22 : vector<2x128xf32>
    %c0_13 = arith.constant 0 : index
    %c0_14 = arith.constant 0 : index
    %c0_15 = arith.constant 0 : index
    %24 = vector.load %arg5[%c0_13, %c0_14, %c0_15] : memref<2x2x128xf32, #tpu.memory_space<vmem>>, vector<1x2x128xf32>
    %25 = vector.shape_cast %24 : vector<1x2x128xf32> to vector<2x128xf32>
    %26 = vector.shape_cast %23 : vector<2x128xf32> to vector<1x2x128xf32>
    tpu.vector_store %arg5[%c0_13, %c0_14, %c0_15], %26 {strides = array<i32>} : memref<2x2x128xf32, #tpu.memory_space<vmem>>, vector<1x2x128xf32>,
    %27 = vector.extract_strided_slice %12 {offsets = [0, 128], sizes = [2, 128], strides = [1, 1]} : vector<2x256xf32> to vector<2x128xf32>
    %cst_16 = arith.constant dense<0xFF800000> : vector<2xf32>
    %28 = vector.multi_reduction <maximumf>, %27, %cst_16 [1] : vector<2x128xf32> to vector<2xf32>
    %29 = vector.shape_cast %28 : vector<2xf32> to vector<2x1xf32>
    %30 = vector.broadcast %29 : vector<2x1xf32> to vector<2x128xf32>
    %31 = arith.subf %27, %30 : vector<2x128xf32>
    %32 = math.exp %31 : vector<2x128xf32>
    %cst_17 = arith.constant dense<0.000000e+00> : vector<2xf32>
    %33 = vector.multi_reduction <add>, %32, %cst_17 [1] : vector<2x128xf32> to vector<2xf32>
    %34 = vector.shape_cast %33 : vector<2xf32> to vector<2x1xf32>
    %35 = math.log %34 : vector<2x1xf32>
    %36 = vector.broadcast %35 : vector<2x1xf32> to vector<2x128xf32>
    %37 = arith.subf %31, %36 : vector<2x128xf32>
    %c1 = arith.constant 1 : index
    %c0_18 = arith.constant 0 : index
    %c0_19 = arith.constant 0 : index
    %38 = vector.load %arg5[%c1, %c0_18, %c0_19] : memref<2x2x128xf32, #tpu.memory_space<vmem>>, vector<1x2x128xf32>
    %39 = vector.shape_cast %38 : vector<1x2x128xf32> to vector<2x128xf32>
    %40 = vector.shape_cast %37 : vector<2x128xf32> to vector<1x2x128xf32>
    tpu.vector_store %arg5[%c1, %c0_18, %c0_19], %40 {strides = array<i32>} : memref<2x2x128xf32, #tpu.memory_space<vmem>>, vector<1x2x128xf32>,
    return
  }
}

</mosaic_0001>

<llo_original>
// kernel: bayesian_mlp_forward.1
$region0: #{bayesian_mlp_forward.1}
  #allocation0 [shape = 'u32[]', space=smem, size = 0x4, offset = 0x4, fixed_abs, tag = 'smem constant byte address 0x4 - core index']
  #allocation1 [shape = 'u32[144,128]{1,0:T(1,128)}', space=vmem, size = 0x12000, scoped, tag = 'internal scratch']
  %s0 = inlined_call_operand.vmem [shape: f32[2,1024], index: 0, kind: input, shape index: {}]
  %s1 = inlined_call_operand.vmem [shape: f32[1024,32], index: 1, kind: input, shape index: {}]
  %s2 = inlined_call_operand.vmem [shape: f32[1,32], index: 2, kind: input, shape index: {}]
  %s3 = inlined_call_operand.vmem [shape: f32[32,256], index: 3, kind: input, shape index: {}]
  %s4 = inlined_call_operand.vmem [shape: f32[1,256], index: 4, kind: input, shape index: {}]
  %s5 = inlined_call_operand.hbm [shape: f32[2,2,128], index: 5, kind: output, shape index: {}]
  %s6 = sld [smem:[#allocation0]]
  $region30: #{bayesian_mlp_forward.1} parent=0
    _
  %s8 = ssub.s32 1, %s6
  %s9 = scalar_select 0, %s8, %s6
  $region1: #{bayesian_mlp_forward.1} parent=0
    #allocation2 [shape = 'u8[2048]{0}', space=vmem, size = 0x800, scoped, tag = 'output window, operand 0, single buffered']
    #allocation3 [shape = 's32[1]{0}', space=sflag, size = 0x4, scoped, tag = 'scoped memory for bayesian_mlp_forward.1']
    %10 = vsyncpa [#allocation3], 0
    // Predicated region
    $region2: #{bayesian_mlp_forward.1} parent=1 // pred_check
      _
    $region3: #{bayesian_mlp_forward.1} parent=1 // pred_check_branch
      %12 = sbr.rel (0) target = $region5
    $region4: #{bayesian_mlp_forward.1} parent=1 // pred_region
      _
    $region5: #{bayesian_mlp_forward.1} parent=1 // pred_fallthru
      _
    // Predicated region
    $region6: #{bayesian_mlp_forward.1} parent=1 // pred_check
      _
    $region7: #{bayesian_mlp_forward.1} parent=1 // pred_check_branch
      %14 = sbr.rel (0) target = $region9
    $region8: #{bayesian_mlp_forward.1} parent=1 // pred_region
      _
    $region9: #{bayesian_mlp_forward.1} parent=1 // pred_fallthru
      _
    // Predicated region
    $region10: #{bayesian_mlp_forward.1} parent=1 // pred_check
      _
    $region11: #{bayesian_mlp_forward.1} parent=1 // pred_check_branch
      %16 = sbr.rel (0) target = $region13
    $region12: #{bayesian_mlp_forward.1} parent=1 // pred_region
      _
    $region13: #{bayesian_mlp_forward.1} parent=1 // pred_fallthru
      _
    // Predicated region
    $region14: #{bayesian_mlp_forward.1} parent=1 // pred_check
      _
    $region15: #{bayesian_mlp_forward.1} parent=1 // pred_check_branch
      %18 = sbr.rel (0) target = $region17
    $region16: #{bayesian_mlp_forward.1} parent=1 // pred_region
      _
    $region17: #{bayesian_mlp_forward.1} parent=1 // pred_fallthru
      _
    // Predicated region
    $region18: #{bayesian_mlp_forward.1} parent=1 // pred_check
      _
    $region19: #{bayesian_mlp_forward.1} parent=1 // pred_check_branch
      %20 = sbr.rel (0) target = $region21
    $region20: #{bayesian_mlp_forward.1} parent=1 // pred_region
      _
    $region21: #{bayesian_mlp_forward.1} parent=1 // pred_fallthru
      _
    %v21 = vld [vmem:[%s0] sm:$0xff]
    %v22 = vld [vmem:[%s0 + $0x8] sm:$0xff]
    %v23 = vld [vmem:[%s1] sm:$0xff]
    %v24 = vld [vmem:[%s1 + $0x8] sm:$0xff]
    %v25 = vld [vmem:[%s1 + $0x10] sm:$0xff]
    %v26 = vld [vmem:[%s1 + $0x18] sm:$0xff]
    %v27 = vld [vmem:[%s1 + $0x20] sm:$0xff]
    %v28 = vld [vmem:[%s1 + $0x28] sm:$0xff]
    %v29 = vld [vmem:[%s1 + $0x30] sm:$0xff]
    %v30 = vld [vmem:[%s1 + $0x38] sm:$0xff]
    %v31 = vld [vmem:[%s1 + $0x40] sm:$0xff]
    %v32 = vld [vmem:[%s1 + $0x48] sm:$0xff]
    %v33 = vld [vmem:[%s1 + $0x50] sm:$0xff]
    %v34 = vld [vmem:[%s1 + $0x58] sm:$0xff]
    %v35 = vld [vmem:[%s1 + $0x60] sm:$0xff]
    %v36 = vld [vmem:[%s1 + $0x68] sm:$0xff]
    %v37 = vld [vmem:[%s1 + $0x70] sm:$0xff]
    %v38 = vld [vmem:[%s1 + $0x78] sm:$0xff]
    %v39 = vld [vmem:[%s1 + $0x80] sm:$0xff]
    %v40 = vld [vmem:[%s1 + $0x88] sm:$0xff]
    %v41 = vld [vmem:[%s1 + $0x90] sm:$0xff]
    %v42 = vld [vmem:[%s1 + $0x98] sm:$0xff]
    %v43 = vld [vmem:[%s1 + $0xa0] sm:$0xff]
    %v44 = vld [vmem:[%s1 + $0xa8] sm:$0xff]
    %v45 = vld [vmem:[%s1 + $0xb0] sm:$0xff]
    %v46 = vld [vmem:[%s1 + $0xb8] sm:$0xff]
    %v47 = vld [vmem:[%s1 + $0xc0] sm:$0xff]
    %v48 = vld [vmem:[%s1 + $0xc8] sm:$0xff]
    %v49 = vld [vmem:[%s1 + $0xd0] sm:$0xff]
    %v50 = vld [vmem:[%s1 + $0xd8] sm:$0xff]
    %v51 = vld [vmem:[%s1 + $0xe0] sm:$0xff]
    %v52 = vld [vmem:[%s1 + $0xe8] sm:$0xff]
    %v53 = vld [vmem:[%s1 + $0xf0] sm:$0xff]
    %v54 = vld [vmem:[%s1 + $0xf8] sm:$0xff]
    %v55 = vld [vmem:[%s1 + $0x100] sm:$0xff]
    %v56 = vld [vmem:[%s1 + $0x108] sm:$0xff]
    %v57 = vld [vmem:[%s1 + $0x110] sm:$0xff]
    %v58 = vld [vmem:[%s1 + $0x118] sm:$0xff]
    %v59 = vld [vmem:[%s1 + $0x120] sm:$0xff]
    %v60 = vld [vmem:[%s1 + $0x128] sm:$0xff]
    %v61 = vld [vmem:[%s1 + $0x130] sm:$0xff]
    %v62 = vld [vmem:[%s1 + $0x138] sm:$0xff]
    %v63 = vld [vmem:[%s1 + $0x140] sm:$0xff]
    %v64 = vld [vmem:[%s1 + $0x148] sm:$0xff]
    %v65 = vld [vmem:[%s1 + $0x150] sm:$0xff]
    %v66 = vld [vmem:[%s1 + $0x158] sm:$0xff]
    %v67 = vld [vmem:[%s1 + $0x160] sm:$0xff]
    %v68 = vld [vmem:[%s1 + $0x168] sm:$0xff]
    %v69 = vld [vmem:[%s1 + $0x170] sm:$0xff]
    %v70 = vld [vmem:[%s1 + $0x178] sm:$0xff]
    %v71 = vld [vmem:[%s1 + $0x180] sm:$0xff]
    %v72 = vld [vmem:[%s1 + $0x188] sm:$0xff]
    %v73 = vld [vmem:[%s1 + $0x190] sm:$0xff]
    %v74 = vld [vmem:[%s1 + $0x198] sm:$0xff]
    %v75 = vld [vmem:[%s1 + $0x1a0] sm:$0xff]
    %v76 = vld [vmem:[%s1 + $0x1a8] sm:$0xff]
    %v77 = vld [vmem:[%s1 + $0x1b0] sm:$0xff]
    %v78 = vld [vmem:[%s1 + $0x1b8] sm:$0xff]
    %v79 = vld [vmem:[%s1 + $0x1c0] sm:$0xff]
    %v80 = vld [vmem:[%s1 + $0x1c8] sm:$0xff]
    %v81 = vld [vmem:[%s1 + $0x1d0] sm:$0xff]
    %v82 = vld [vmem:[%s1 + $0x1d8] sm:$0xff]
    %v83 = vld [vmem:[%s1 + $0x1e0] sm:$0xff]
    %v84 = vld [vmem:[%s1 + $0x1e8] sm:$0xff]
    %v85 = vld [vmem:[%s1 + $0x1f0] sm:$0xff]
    %v86 = vld [vmem:[%s1 + $0x1f8] sm:$0xff]
    %v87 = vld [vmem:[%s1 + $0x200] sm:$0xff]
    %v88 = vld [vmem:[%s1 + $0x208] sm:$0xff]
    %v89 = vld [vmem:[%s1 + $0x210] sm:$0xff]
    %v90 = vld [vmem:[%s1 + $0x218] sm:$0xff]
    %v91 = vld [vmem:[%s1 + $0x220] sm:$0xff]
    %v92 = vld [vmem:[%s1 + $0x228] sm:$0xff]
    %v93 = vld [vmem:[%s1 + $0x230] sm:$0xff]
    %v94 = vld [vmem:[%s1 + $0x238] sm:$0xff]
    %v95 = vld [vmem:[%s1 + $0x240] sm:$0xff]
    %v96 = vld [vmem:[%s1 + $0x248] sm:$0xff]
    %v97 = vld [vmem:[%s1 + $0x250] sm:$0xff]
    %v98 = vld [vmem:[%s1 + $0x258] sm:$0xff]
    %v99 = vld [vmem:[%s1 + $0x260] sm:$0xff]
    %v100 = vld [vmem:[%s1 + $0x268] sm:$0xff]
    %v101 = vld [vmem:[%s1 + $0x270] sm:$0xff]
    %v102 = vld [vmem:[%s1 + $0x278] sm:$0xff]
    %v103 = vld [vmem:[%s1 + $0x280] sm:$0xff]
    %v104 = vld [vmem:[%s1 + $0x288] sm:$0xff]
    %v105 = vld [vmem:[%s1 + $0x290] sm:$0xff]
    %v106 = vld [vmem:[%s1 + $0x298] sm:$0xff]
    %v107 = vld [vmem:[%s1 + $0x2a0] sm:$0xff]
    %v108 = vld [vmem:[%s1 + $0x2a8] sm:$0xff]
    %v109 = vld [vmem:[%s1 + $0x2b0] sm:$0xff]
    %v110 = vld [vmem:[%s1 + $0x2b8] sm:$0xff]
    %v111 = vld [vmem:[%s1 + $0x2c0] sm:$0xff]
    %v112 = vld [vmem:[%s1 + $0x2c8] sm:$0xff]
    %v113 = vld [vmem:[%s1 + $0x2d0] sm:$0xff]
    %v114 = vld [vmem:[%s1 + $0x2d8] sm:$0xff]
    %v115 = vld [vmem:[%s1 + $0x2e0] sm:$0xff]
    %v116 = vld [vmem:[%s1 + $0x2e8] sm:$0xff]
    %v117 = vld [vmem:[%s1 + $0x2f0] sm:$0xff]
    %v118 = vld [vmem:[%s1 + $0x2f8] sm:$0xff]
    %v119 = vld [vmem:[%s1 + $0x300] sm:$0xff]
    %v120 = vld [vmem:[%s1 + $0x308] sm:$0xff]
    %v121 = vld [vmem:[%s1 + $0x310] sm:$0xff]
    %v122 = vld [vmem:[%s1 + $0x318] sm:$0xff]
    %v123 = vld [vmem:[%s1 + $0x320] sm:$0xff]
    %v124 = vld [vmem:[%s1 + $0x328] sm:$0xff]
    %v125 = vld [vmem:[%s1 + $0x330] sm:$0xff]
    %v126 = vld [vmem:[%s1 + $0x338] sm:$0xff]
    %v127 = vld [vmem:[%s1 + $0x340] sm:$0xff]
    %v128 = vld [vmem:[%s1 + $0x348] sm:$0xff]
    %v129 = vld [vmem:[%s1 + $0x350] sm:$0xff]
    %v130 = vld [vmem:[%s1 + $0x358] sm:$0xff]
    %v131 = vld [vmem:[%s1 + $0x360] sm:$0xff]
    %v132 = vld [vmem:[%s1 + $0x368] sm:$0xff]
    %v133 = vld [vmem:[%s1 + $0x370] sm:$0xff]
    %v134 = vld [vmem:[%s1 + $0x378] sm:$0xff]
    %v135 = vld [vmem:[%s1 + $0x380] sm:$0xff]
    %v136 = vld [vmem:[%s1 + $0x388] sm:$0xff]
    %v137 = vld [vmem:[%s1 + $0x390] sm:$0xff]
    %v138 = vld [vmem:[%s1 + $0x398] sm:$0xff]
    %v139 = vld [vmem:[%s1 + $0x3a0] sm:$0xff]
    %v140 = vld [vmem:[%s1 + $0x3a8] sm:$0xff]
    %v141 = vld [vmem:[%s1 + $0x3b0] sm:$0xff]
    %v142 = vld [vmem:[%s1 + $0x3b8] sm:$0xff]
    %v143 = vld [vmem:[%s1 + $0x3c0] sm:$0xff]
    %v144 = vld [vmem:[%s1 + $0x3c8] sm:$0xff]
    %v145 = vld [vmem:[%s1 + $0x3d0] sm:$0xff]
    %v146 = vld [vmem:[%s1 + $0x3d8] sm:$0xff]
    %v147 = vld [vmem:[%s1 + $0x3e0] sm:$0xff]
    %v148 = vld [vmem:[%s1 + $0x3e8] sm:$0xff]
    %v149 = vld [vmem:[%s1 + $0x3f0] sm:$0xff]
    %v150 = vld [vmem:[%s1 + $0x3f8] sm:$0xff]
    %v151 = vld [vmem:[%s2] sm:$0x1]
    %v153 = vlaneseq
    %v154 = vshrl.u32 %v153, 7
    %v155 = vsub.s32 0, %v154
    %v156 = vrot.slane %v151, %v155
    %v160 = vcombine.high %v21, %v21
    %v162 = vunpack.c.l.s4 1983009808
    %v163 = vunpack.c.0.s8 %v162
    %v164 = vlaneseq
    %v165 = vshrl.u32 %v164, 7
    %v166 = vsub.s32 %v163, %v165
    %v167 = vrot.slane %v21, %v166
    %v169 = vunpack.c.l.s4 1983009808
    %v170 = vunpack.c.0.s8 %v169
    %v171 = vlaneseq
    %v172 = vshrl.u32 %v171, 7
    %v173 = vsub.s32 %v170, %v172
    %v174 = vrot.slane %v160, %v173
    %v175 = vcombine.high %v167, %v167
    %v176 = vcombine.high %v174, %v174
    %v177 = vcombine.high %v22, %v22
    %v179 = vunpack.c.l.s4 1983009808
    %v180 = vunpack.c.0.s8 %v179
    %v181 = vlaneseq
    %v182 = vshrl.u32 %v181, 7
    %v183 = vsub.s32 %v180, %v182
    %v184 = vrot.slane %v22, %v183
    %v186 = vunpack.c.l.s4 1983009808
    %v187 = vunpack.c.0.s8 %v186
    %v188 = vlaneseq
    %v189 = vshrl.u32 %v188, 7
    %v190 = vsub.s32 %v187, %v189
    %v191 = vrot.slane %v177, %v190
    %v192 = vcombine.high %v184, %v184
    %v193 = vcombine.high %v191, %v191
    %202 = vmatprep.subr.mxu0 0.0
    %203 = vmatpush1.msra.mxu0 %v38
    %204 = vmatprep.subr.mxu0 0.0
    %205 = vmatpush1.msra.mxu0 %v37
    %206 = vmatprep.subr.mxu0 0.0
    %207 = vmatpush1.msra.mxu0 %v36
    %208 = vmatprep.subr.mxu0 0.0
    %209 = vmatpush1.msra.mxu0 %v35
    %210 = vmatprep.subr.mxu0 0.0
    %211 = vmatpush1.msra.mxu0 %v34
    %212 = vmatprep.subr.mxu0 0.0
    %213 = vmatpush1.msra.mxu0 %v33
    %214 = vmatprep.subr.mxu0 0.0
    %215 = vmatpush1.msra.mxu0 %v32
    %216 = vmatprep.subr.mxu0 0.0
    %217 = vmatpush1.msra.mxu0 %v31
    %218 = vmatprep.subr.mxu0 0.0
    %219 = vmatpush1.msra.mxu0 %v30
    %220 = vmatprep.subr.mxu0 0.0
    %221 = vmatpush1.msra.mxu0 %v29
    %222 = vmatprep.subr.mxu0 0.0
    %223 = vmatpush1.msra.mxu0 %v28
    %224 = vmatprep.subr.mxu0 0.0
    %225 = vmatpush1.msra.mxu0 %v27
    %226 = vmatprep.subr.mxu0 0.0
    %227 = vmatpush1.msra.mxu0 %v26
    %228 = vmatprep.subr.mxu0 0.0
    %229 = vmatpush1.msra.mxu0 %v25
    %230 = vmatprep.subr.mxu0 0.0
    %231 = vmatpush1.msra.mxu0 %v24
    %232 = vmatprep.subr.mxu0 0.0
    %233 = vmatpush1.msra.mxu0 %v23
    %234 = vmatprep.subr.mxu0 0.0
    %235 = vmatpush2.msra.mxu0 %v54
    %236 = vmatprep.subr.mxu0 0.0
    %237 = vmatpush2.msra.mxu0 %v53
    %238 = vmatprep.subr.mxu0 0.0
    %239 = vmatpush2.msra.mxu0 %v52
    %240 = vmatprep.subr.mxu0 0.0
    %241 = vmatpush2.msra.mxu0 %v51
    %242 = vmatprep.subr.mxu0 0.0
    %243 = vmatpush2.msra.mxu0 %v50
    %244 = vmatprep.subr.mxu0 0.0
    %245 = vmatpush2.msra.mxu0 %v49
    %246 = vmatprep.subr.mxu0 0.0
    %247 = vmatpush2.msra.mxu0 %v48
    %248 = vmatprep.subr.mxu0 0.0
    %249 = vmatpush2.msra.mxu0 %v47
    %250 = vmatprep.subr.mxu0 0.0
    %251 = vmatpush2.msra.mxu0 %v46
    %252 = vmatprep.subr.mxu0 0.0
    %253 = vmatpush2.msra.mxu0 %v45
    %254 = vmatprep.subr.mxu0 0.0
    %255 = vmatpush2.msra.mxu0 %v44
    %256 = vmatprep.subr.mxu0 0.0
    %257 = vmatpush2.msra.mxu0 %v43
    %258 = vmatprep.subr.mxu0 0.0
    %259 = vmatpush2.msra.mxu0 %v42
    %260 = vmatprep.subr.mxu0 0.0
    %261 = vmatpush2.msra.mxu0 %v41
    %262 = vmatprep.subr.mxu0 0.0
    %263 = vmatpush2.msra.mxu0 %v40
    %264 = vmatprep.subr.mxu0 0.0
    %265 = vmatpush2.msra.mxu0 %v39
    %266 = vmatprep.mubr.f32.mxu0 %v175
    %267 = vmatmul.mubr.f32.gmra.mxu0 %v167
    %v268 = vpop.f32.mrf.mxu0
    %v269 = vadd.f32 %v156, %v268
    %v270 = vpop.f32.mrf.mxu0
    %271 = vdwg.mxu0
    %272 = vmatprep.subr.mxu0 0.0
    %273 = vmatpush1.msra.mxu0 %v70
    %274 = vmatprep.subr.mxu0 0.0
    %275 = vmatpush1.msra.mxu0 %v69
    %276 = vmatprep.subr.mxu0 0.0
    %277 = vmatpush1.msra.mxu0 %v68
    %278 = vmatprep.subr.mxu0 0.0
    %279 = vmatpush1.msra.mxu0 %v67
    %280 = vmatprep.subr.mxu0 0.0
    %281 = vmatpush1.msra.mxu0 %v66
    %282 = vmatprep.subr.mxu0 0.0
    %283 = vmatpush1.msra.mxu0 %v65
    %284 = vmatprep.subr.mxu0 0.0
    %285 = vmatpush1.msra.mxu0 %v64
    %286 = vmatprep.subr.mxu0 0.0
    %287 = vmatpush1.msra.mxu0 %v63
    %288 = vmatprep.subr.mxu0 0.0
    %289 = vmatpush1.msra.mxu0 %v62
    %290 = vmatprep.subr.mxu0 0.0
    %291 = vmatpush1.msra.mxu0 %v61
    %292 = vmatprep.subr.mxu0 0.0
    %293 = vmatpush1.msra.mxu0 %v60
    %294 = vmatprep.subr.mxu0 0.0
    %295 = vmatpush1.msra.mxu0 %v59
    %296 = vmatprep.subr.mxu0 0.0
    %297 = vmatpush1.msra.mxu0 %v58
    %298 = vmatprep.subr.mxu0 0.0
    %299 = vmatpush1.msra.mxu0 %v57
    %300 = vmatprep.subr.mxu0 0.0
    %301 = vmatpush1.msra.mxu0 %v56
    %302 = vmatprep.subr.mxu0 0.0
    %303 = vmatpush1.msra.mxu0 %v55
    %304 = vmatprep.subr.mxu0 0.0
    %305 = vmatpush2.msra.mxu0 %v86
    %306 = vmatprep.subr.mxu0 0.0
    %307 = vmatpush2.msra.mxu0 %v85
    %308 = vmatprep.subr.mxu0 0.0
    %309 = vmatpush2.msra.mxu0 %v84
    %310 = vmatprep.subr.mxu0 0.0
    %311 = vmatpush2.msra.mxu0 %v83
    %312 = vmatprep.subr.mxu0 0.0
    %313 = vmatpush2.msra.mxu0 %v82
    %314 = vmatprep.subr.mxu0 0.0
    %315 = vmatpush2.msra.mxu0 %v81
    %316 = vmatprep.subr.mxu0 0.0
    %317 = vmatpush2.msra.mxu0 %v80
    %318 = vmatprep.subr.mxu0 0.0
    %319 = vmatpush2.msra.mxu0 %v79
    %320 = vmatprep.subr.mxu0 0.0
    %321 = vmatpush2.msra.mxu0 %v78
    %322 = vmatprep.subr.mxu0 0.0
    %323 = vmatpush2.msra.mxu0 %v77
    %324 = vmatprep.subr.mxu0 0.0
    %325 = vmatpush2.msra.mxu0 %v76
    %326 = vmatprep.subr.mxu0 0.0
    %327 = vmatpush2.msra.mxu0 %v75
    %328 = vmatprep.subr.mxu0 0.0
    %329 = vmatpush2.msra.mxu0 %v74
    %330 = vmatprep.subr.mxu0 0.0
    %331 = vmatpush2.msra.mxu0 %v73
    %332 = vmatprep.subr.mxu0 0.0
    %333 = vmatpush2.msra.mxu0 %v72
    %334 = vmatprep.subr.mxu0 0.0
    %335 = vmatpush2.msra.mxu0 %v71
    %336 = vmatprep.mubr.f32.mxu0 %v176
    %337 = vmatmul.mubr.f32.gmra.mxu0 %v174
    %v338 = vpop.f32.mrf.mxu0
    %v339 = vadd.f32 %v269, %v338
    %v340 = vpop.f32.mrf.mxu0
    %341 = vdwg.mxu0
    %342 = vmatprep.subr.mxu0 0.0
    %343 = vmatpush1.msra.mxu0 %v102
    %344 = vmatprep.subr.mxu0 0.0
    %345 = vmatpush1.msra.mxu0 %v101
    %346 = vmatprep.subr.mxu0 0.0
    %347 = vmatpush1.msra.mxu0 %v100
    %348 = vmatprep.subr.mxu0 0.0
    %349 = vmatpush1.msra.mxu0 %v99
    %350 = vmatprep.subr.mxu0 0.0
    %351 = vmatpush1.msra.mxu0 %v98
    %352 = vmatprep.subr.mxu0 0.0
    %353 = vmatpush1.msra.mxu0 %v97
    %354 = vmatprep.subr.mxu0 0.0
    %355 = vmatpush1.msra.mxu0 %v96
    %356 = vmatprep.subr.mxu0 0.0
    %357 = vmatpush1.msra.mxu0 %v95
    %358 = vmatprep.subr.mxu0 0.0
    %359 = vmatpush1.msra.mxu0 %v94
    %360 = vmatprep.subr.mxu0 0.0
    %361 = vmatpush1.msra.mxu0 %v93
    %362 = vmatprep.subr.mxu0 0.0
    %363 = vmatpush1.msra.mxu0 %v92
    %364 = vmatprep.subr.mxu0 0.0
    %365 = vmatpush1.msra.mxu0 %v91
    %366 = vmatprep.subr.mxu0 0.0
    %367 = vmatpush1.msra.mxu0 %v90
    %368 = vmatprep.subr.mxu0 0.0
    %369 = vmatpush1.msra.mxu0 %v89
    %370 = vmatprep.subr.mxu0 0.0
    %371 = vmatpush1.msra.mxu0 %v88
    %372 = vmatprep.subr.mxu0 0.0
    %373 = vmatpush1.msra.mxu0 %v87
    %374 = vmatprep.subr.mxu0 0.0
    %375 = vmatpush2.msra.mxu0 %v118
    %376 = vmatprep.subr.mxu0 0.0
    %377 = vmatpush2.msra.mxu0 %v117
    %378 = vmatprep.subr.mxu0 0.0
    %379 = vmatpush2.msra.mxu0 %v116
    %380 = vmatprep.subr.mxu0 0.0
    %381 = vmatpush2.msra.mxu0 %v115
    %382 = vmatprep.subr.mxu0 0.0
    %383 = vmatpush2.msra.mxu0 %v114
    %384 = vmatprep.subr.mxu0 0.0
    %385 = vmatpush2.msra.mxu0 %v113
    %386 = vmatprep.subr.mxu0 0.0
    %387 = vmatpush2.msra.mxu0 %v112
    %388 = vmatprep.subr.mxu0 0.0
    %389 = vmatpush2.msra.mxu0 %v111
    %390 = vmatprep.subr.mxu0 0.0
    %391 = vmatpush2.msra.mxu0 %v110
    %392 = vmatprep.subr.mxu0 0.0
    %393 = vmatpush2.msra.mxu0 %v109
    %394 = vmatprep.subr.mxu0 0.0
    %395 = vmatpush2.msra.mxu0 %v108
    %396 = vmatprep.subr.mxu0 0.0
    %397 = vmatpush2.msra.mxu0 %v107
    %398 = vmatprep.subr.mxu0 0.0
    %399 = vmatpush2.msra.mxu0 %v106
    %400 = vmatprep.subr.mxu0 0.0
    %401 = vmatpush2.msra.mxu0 %v105
    %402 = vmatprep.subr.mxu0 0.0
    %403 = vmatpush2.msra.mxu0 %v104
    %404 = vmatprep.subr.mxu0 0.0
    %405 = vmatpush2.msra.mxu0 %v103
    %406 = vmatprep.mubr.f32.mxu0 %v192
    %407 = vmatmul.mubr.f32.gmra.mxu0 %v184
    %v408 = vpop.f32.mrf.mxu0
    %v409 = vadd.f32 %v339, %v408
    %v410 = vpop.f32.mrf.mxu0
    %411 = vdwg.mxu0
    %412 = vmatprep.subr.mxu0 0.0
    %413 = vmatpush1.msra.mxu0 %v134
    %414 = vmatprep.subr.mxu0 0.0
    %415 = vmatpush1.msra.mxu0 %v133
    %416 = vmatprep.subr.mxu0 0.0
    %417 = vmatpush1.msra.mxu0 %v132
    %418 = vmatprep.subr.mxu0 0.0
    %419 = vmatpush1.msra.mxu0 %v131
    %420 = vmatprep.subr.mxu0 0.0
    %421 = vmatpush1.msra.mxu0 %v130
    %422 = vmatprep.subr.mxu0 0.0
    %423 = vmatpush1.msra.mxu0 %v129
    %424 = vmatprep.subr.mxu0 0.0
    %425 = vmatpush1.msra.mxu0 %v128
    %426 = vmatprep.subr.mxu0 0.0
    %427 = vmatpush1.msra.mxu0 %v127
    %428 = vmatprep.subr.mxu0 0.0
    %429 = vmatpush1.msra.mxu0 %v126
    %430 = vmatprep.subr.mxu0 0.0
    %431 = vmatpush1.msra.mxu0 %v125
    %432 = vmatprep.subr.mxu0 0.0
    %433 = vmatpush1.msra.mxu0 %v124
    %434 = vmatprep.subr.mxu0 0.0
    %435 = vmatpush1.msra.mxu0 %v123
    %436 = vmatprep.subr.mxu0 0.0
    %437 = vmatpush1.msra.mxu0 %v122
    %438 = vmatprep.subr.mxu0 0.0
    %439 = vmatpush1.msra.mxu0 %v121
    %440 = vmatprep.subr.mxu0 0.0
    %441 = vmatpush1.msra.mxu0 %v120
    %442 = vmatprep.subr.mxu0 0.0
    %443 = vmatpush1.msra.mxu0 %v119
    %444 = vmatprep.subr.mxu0 0.0
    %445 = vmatpush2.msra.mxu0 %v150
    %446 = vmatprep.subr.mxu0 0.0
    %447 = vmatpush2.msra.mxu0 %v149
    %448 = vmatprep.subr.mxu0 0.0
    %449 = vmatpush2.msra.mxu0 %v148
    %450 = vmatprep.subr.mxu0 0.0
    %451 = vmatpush2.msra.mxu0 %v147
    %452 = vmatprep.subr.mxu0 0.0
    %453 = vmatpush2.msra.mxu0 %v146
    %454 = vmatprep.subr.mxu0 0.0
    %455 = vmatpush2.msra.mxu0 %v145
    %456 = vmatprep.subr.mxu0 0.0
    %457 = vmatpush2.msra.mxu0 %v144
    %458 = vmatprep.subr.mxu0 0.0
    %459 = vmatpush2.msra.mxu0 %v143
    %460 = vmatprep.subr.mxu0 0.0
    %461 = vmatpush2.msra.mxu0 %v142
    %462 = vmatprep.subr.mxu0 0.0
    %463 = vmatpush2.msra.mxu0 %v141
    %464 = vmatprep.subr.mxu0 0.0
    %465 = vmatpush2.msra.mxu0 %v140
    %466 = vmatprep.subr.mxu0 0.0
    %467 = vmatpush2.msra.mxu0 %v139
    %468 = vmatprep.subr.mxu0 0.0
    %469 = vmatpush2.msra.mxu0 %v138
    %470 = vmatprep.subr.mxu0 0.0
    %471 = vmatpush2.msra.mxu0 %v137
    %472 = vmatprep.subr.mxu0 0.0
    %473 = vmatpush2.msra.mxu0 %v136
    %474 = vmatprep.subr.mxu0 0.0
    %475 = vmatpush2.msra.mxu0 %v135
    %476 = vmatprep.mubr.f32.mxu0 %v193
    %477 = vmatmul.mubr.f32.gmra.mxu0 %v191
    %v478 = vpop.f32.mrf.mxu0
    %v479 = vadd.f32 %v409, %v478
    %v480 = vpop.f32.mrf.mxu0
    %481 = vdwg.mxu0
    %v482 = vmax.f32 %v479, 0.0
    %v483 = vld [vmem:[%s3] sm:$0xff]
    %v484 = vld [vmem:[%s3 + $0x8] sm:$0xff]
    %v485 = vld [vmem:[%s3 + $0x10] sm:$0xff]
    %v486 = vld [vmem:[%s3 + $0x18] sm:$0xff]
    %v487 = vld [vmem:[%s3 + $0x20] sm:$0xff]
    %v488 = vld [vmem:[%s3 + $0x28] sm:$0xff]
    %v489 = vld [vmem:[%s3 + $0x30] sm:$0xff]
    %v490 = vld [vmem:[%s3 + $0x38] sm:$0xff]
    %v491 = vld [vmem:[%s4] sm:$0x3]
    %v493 = vlaneseq
    %v494 = vshrl.u32 %v493, 7
    %v495 = vsub.s32 0, %v494
    %v496 = vrot.slane %v491, %v495
    %v497 = vlaneseq
    %v498 = vshrl.u32 %v497, 7
    %v499 = vsub.s32 1, %v498
    %v500 = vrot.slane %v491, %v499
    %vm503 = vcmask 261120
    %v505 = vsel %vm503, %v482, 0
    %507 = vmatprep.subr.mxu0 0.0
    %508 = vmatpush1.msra.mxu0 0.0
    %509 = vmatprep.subr.mxu0 0.0
    %510 = vmatpush1.msra.mxu0 0.0
    %511 = vmatprep.subr.mxu0 0.0
    %512 = vmatpush1.msra.mxu0 0.0
    %513 = vmatprep.subr.mxu0 0.0
    %514 = vmatpush1.msra.mxu0 0.0
    %515 = vmatprep.subr.mxu0 0.0
    %516 = vmatpush1.msra.mxu0 0.0
    %517 = vmatprep.subr.mxu0 0.0
    %518 = vmatpush1.msra.mxu0 0.0
    %519 = vmatprep.subr.mxu0 0.0
    %520 = vmatpush1.msra.mxu0 0.0
    %521 = vmatprep.subr.mxu0 0.0
    %522 = vmatpush1.msra.mxu0 0.0
    %523 = vmatprep.subr.mxu0 0.0
    %524 = vmatpush1.msra.mxu0 0.0
    %525 = vmatprep.subr.mxu0 0.0
    %526 = vmatpush1.msra.mxu0 0.0
    %527 = vmatprep.subr.mxu0 0.0
    %528 = vmatpush1.msra.mxu0 0.0
    %529 = vmatprep.subr.mxu0 0.0
    %530 = vmatpush1.msra.mxu0 0.0
    %531 = vmatprep.subr.mxu0 %v490
    %532 = vmatpush1.msra.mxu0 %v489
    %533 = vmatprep.subr.mxu0 %v488
    %534 = vmatpush1.msra.mxu0 %v487
    %535 = vmatprep.subr.mxu0 %v486
    %536 = vmatpush1.msra.mxu0 %v485
    %537 = vmatprep.subr.mxu0 %v484
    %538 = vmatpush1.msra.mxu0 %v483
    %539 = vmatprep.subr.mxu0 0.0
    %540 = vmatpush2.msra.mxu0 0.0
    %541 = vmatprep.subr.mxu0 0.0
    %542 = vmatpush2.msra.mxu0 0.0
    %543 = vmatprep.subr.mxu0 0.0
    %544 = vmatpush2.msra.mxu0 0.0
    %545 = vmatprep.subr.mxu0 0.0
    %546 = vmatpush2.msra.mxu0 0.0
    %547 = vmatprep.subr.mxu0 0.0
    %548 = vmatpush2.msra.mxu0 0.0
    %549 = vmatprep.subr.mxu0 0.0
    %550 = vmatpush2.msra.mxu0 0.0
    %551 = vmatprep.subr.mxu0 0.0
    %552 = vmatpush2.msra.mxu0 0.0
    %553 = vmatprep.subr.mxu0 0.0
    %554 = vmatpush2.msra.mxu0 0.0
    %555 = vmatprep.subr.mxu0 0.0
    %556 = vmatpush2.msra.mxu0 0.0
    %557 = vmatprep.subr.mxu0 0.0
    %558 = vmatpush2.msra.mxu0 0.0
    %559 = vmatprep.subr.mxu0 0.0
    %560 = vmatpush2.msra.mxu0 0.0
    %561 = vmatprep.subr.mxu0 0.0
    %562 = vmatpush2.msra.mxu0 0.0
    %563 = vmatprep.subr.mxu0 0.0
    %564 = vmatpush2.msra.mxu0 0.0
    %565 = vmatprep.subr.mxu0 0.0
    %566 = vmatpush2.msra.mxu0 0.0
    %567 = vmatprep.subr.mxu0 0.0
    %568 = vmatpush2.msra.mxu0 0.0
    %569 = vmatprep.subr.mxu0 0.0
    %570 = vmatpush2.msra.mxu0 0.0
    %571 = vmatprep.mubr.f32.mxu0 0.0
    %572 = vmatmul.mubr.f32.gmra.mxu0 %v505
    %v573 = vpop.f32.mrf.mxu0
    %v574 = vadd.f32 %v496, %v573
    %v575 = vpop.f32.mrf.mxu0
    %v576 = vadd.f32 %v500, %v575
    %577 = vdwg.mxu0
    %vm578 = vcmask 1041408
    %v579 = vsel %vm578, %v574, -inf
    %580 = vmax.xlane.f32.xlu0 %v579
    %v581 = vpop.xlane.xlu0 %580
    %v582 = vsub.f32 %v574, %v581
    %v583 = vmul.f32 %v582, 1.442695
    %v584 = vpow.pop %v583
    %v585 = vsel %vm578, %v584, 0.0
    %586 = vadd.xlane.f32.xlu0 %v585
    %v587 = vpop.xlane.xlu0 %586
    %v588 = vlog2.pop %v587
    %v589 = vmul.f32 %v588, 0.6931472
    %v590 = vsub.f32 %v582, %v589
    %591 = vst [vmem:[#allocation2] sm:$0x3] %v590
    %v592 = vsel %vm578, %v576, -inf
    %593 = vmax.xlane.f32.xlu0 %v592
    %v594 = vpop.xlane.xlu0 %593
    %v595 = vsub.f32 %v576, %v594
    %v596 = vmul.f32 %v595, 1.442695
    %v597 = vpow.pop %v596
    %v598 = vsel %vm578, %v597, 0.0
    %599 = vadd.xlane.f32.xlu0 %v598
    %v600 = vpop.xlane.xlu0 %599
    %v601 = vlog2.pop %v600
    %v602 = vmul.f32 %v601, 0.6931472
    %v603 = vsub.f32 %v595, %v602
    %s604 = scalar_lea.vmem [#allocation2], 2
    %605 = vst [vmem:[%s604] sm:$0x3] %v603
    // Predicated region
    $region22: #{bayesian_mlp_forward.1} parent=1 // pred_check
      _
    $region23: #{bayesian_mlp_forward.1} parent=1 // pred_check_branch
      %607 = sbr.rel (0) target = $region25
    $region24: #{bayesian_mlp_forward.1} parent=1 // pred_region
      %s609 = ssub.s32 64, 64
      %610 = vsyncadd [#allocation3], %s609
      %s611 = sshll.u32 [#allocation2], 4
      %s612 = int_to_ptr.vmem [resolvable:$true] %s611
      %617 = dma.vmem_to_hbm [thread:$0]  %s612, 64, %s5, [#allocation3], 32, 32, 2
    $region25: #{bayesian_mlp_forward.1} parent=1 // pred_fallthru
      _
    // Predicated region
    $region26: #{bayesian_mlp_forward.1} parent=1 // pred_check
      _
    $region27: #{bayesian_mlp_forward.1} parent=1 // pred_check_branch
      %619 = sbr.rel (0) target = $region29
    $region28: #{bayesian_mlp_forward.1} parent=1 // pred_region
      %620 = dma.done [#allocation3], 64
    $region29: #{bayesian_mlp_forward.1} parent=1 // pred_fallthru
      _
    %621 = vsyncpa [#allocation3], 1

</llo_original>
